<compile_context>
chip_gen: v6e
topology: v6e:2x2x1
jax: 0.10.0
libtpu: 0.0.40
codegen_flags: <defaults>
</compile_context>

<pallas_src>
import functools

import jax
import jax.numpy as jnp
from jax.experimental import pallas as pl
from jax.experimental.pallas import tpu as pltpu

_LANES = 128
_MAX_BLOCK_ROWS = 2048           # 2048 x 128 x 4 B = 1 MiB per stream per buffer
_PAD_LOGIT = -1e4                # sentinel: exp(-1e4)=0 -> focal term is exactly 0
_VMEM_LIMIT = 64 * 1024 * 1024


def _plan(n):
    """Choose (block_rows, nsplits, steps, rows_padded) for n flat elements."""
    rows = pl.cdiv(n, _LANES)
    if rows <= _MAX_BLOCK_ROWS:
        # Single full-array block (exempt from the (8,128) divisibility rule);
        # rows only rounded to 8 so the (r//8, 8, 128) partial-reduce reshape
        # in the kernel stays a pure view.
        block_rows = pl.cdiv(rows, 8) * 8
        return block_rows, 1, 1, block_rows
    block_rows = _MAX_BLOCK_ROWS       # multiple of 32: fine for f32/bf16/int8
    total = pl.cdiv(rows, block_rows)
    nsplits = 2 if total >= 2 else 1   # 2-way split -> both TCs on v7x
    steps = pl.cdiv(total, nsplits)
    return block_rows, nsplits, steps, block_rows * nsplits * steps


def _prep(flat, rows_padded, pad_value):
    """Reshape a flat stream to (rows_padded, 128); sentinel-pad only if needed."""
    n = flat.shape[0]
    pad = rows_padded * _LANES - n
    if pad:
        # TODO(synk): a separate tail-block path would avoid this full-array pad
        # copy; common NN shapes hit the pad == 0 fast path (no copy at all).
        flat = jnp.pad(flat, (0, pad), constant_values=pad_value)
    return flat.reshape(rows_padded, _LANES)


def _focal_terms(x_raw, t_raw, alpha, gamma, binary_targets, approx_recip):
    """Elementwise focal loss; inputs in native dtype, compute in f32."""
    x = x_raw.astype(jnp.float32)
    t = t_raw.astype(jnp.float32)

    e = jnp.exp(-jnp.abs(x))                       # reused transcendental
    denom = 1.0 + e
    if approx_recip:
        inv = pl.reciprocal(denom, approx=True)    # EUP vrcp (v7x win)
    else:
        inv = 1.0 / denom
    p = jnp.where(x >= 0, inv, e * inv)            # sigmoid(x) from e
    log1p_e = jnp.log1p(e)

    if binary_targets:
        # {0,1} targets: selects instead of the multiply-add chain.
        pos = t >= 0.5
        bce = jnp.maximum(x, 0.0) - jnp.where(pos, x, 0.0) + log1p_e
        one_m = jnp.where(pos, 1.0 - p, p)         # == 1 - pt
    else:
        # Numerically stable BCE-with-logits: max(x,0) - x*t + log1p(exp(-|x|))
        bce = jnp.maximum(x, 0.0) - x * t + log1p_e
        pt = p * t + (1.0 - p) * (1.0 - t)
        one_m = 1.0 - pt

    g = float(gamma)
    if g == 0.0:
        w = jnp.ones_like(one_m)
    elif g.is_integer() and 0 < g <= 8:
        w = one_m
        for _ in range(int(g) - 1):                # gamma=2 -> single multiply
            w = w * one_m
    else:
        w = jnp.power(one_m, g)                    # general (non-integer) gamma
    return (alpha * w) * bce


def _focal_reduce_kernel(x_ref, t_ref, out_ref, acc_ref, *,
                         alpha, gamma, scale, block_rows, steps,
                         binary_targets, approx_recip):
    """Grid (splits, steps): accumulate per-split partial sums into (8,128)."""
    i = pl.program_id(1)

    @pl.when(i == 0)
    def _():
        acc_ref[...] = jnp.zeros_like(acc_ref)

    fl = _focal_terms(x_ref[...], t_ref[...], alpha, gamma,
                      binary_targets, approx_recip)

    # Partial-reduce the block onto the (8,128) vector accumulator (pure VPU
    # adds); the cross-lane/sublane reduce is deferred to the tiny wrapper sum.
    acc_ref[...] += jnp.sum(fl.reshape(block_rows // 8, 8, _LANES), axis=0)

    @pl.when(i == steps - 1)
    def _():
        out_ref[0] = acc_ref[...] * scale


def _focal_elem_kernel(x_ref, t_ref, o_ref, *, alpha, gamma,
                       binary_targets, approx_recip):
    fl = _focal_terms(x_ref[...], t_ref[...], alpha, gamma,
                      binary_targets, approx_recip)
    o_ref[...] = fl.astype(o_ref.dtype)


def focal_loss(inputs, targets, *, alpha=1.0, gamma=2.0, reduction="mean",
               assume_binary_targets=False):
    """Pallas TPU implementation of FocalLoss.forward.

    `assume_binary_targets=True` enables the shorter select-based compute
    chain (identical results for exactly {0,1} targets); leave False to keep
    full soft-label semantics of the PyTorch module.
    """
    orig_shape = inputs.shape
    n = int(inputs.size)

    block_rows, nsplits, steps, rows_padded = _plan(n)

    x = inputs.reshape(-1)            # native dtype; no wrapper-side up-cast
    t = targets.reshape(-1)
    if t.dtype == jnp.bool_:
        t = t.astype(jnp.int8)        # avoid i1 layout edge cases, still 1 B/elem
    # Sentinel padding (x -> -1e4, t -> 0): padded elements contribute exactly
    # 0, so the kernel needs no tail mask at all.
    x = _prep(x, rows_padded, _PAD_LOGIT)
    t = _prep(t, rows_padded, 0)

    if reduction in ("mean", "sum"):
        scale = (1.0 / n) if reduction == "mean" else 1.0
        kernel = functools.partial(
            _focal_reduce_kernel, alpha=float(alpha), gamma=float(gamma),
            scale=float(scale), block_rows=block_rows, steps=steps,
            binary_targets=bool(assume_binary_targets), approx_recip=True)
        in_spec = pl.BlockSpec((block_rows, _LANES),
                               lambda s, i: (s * steps + i, 0))
        partials = pl.pallas_call(
            kernel,
            out_shape=jax.ShapeDtypeStruct((nsplits, 8, _LANES), jnp.float32),
            grid_spec=pltpu.PrefetchScalarGridSpec(
                num_scalar_prefetch=0,
                grid=(nsplits, steps),
                in_specs=[in_spec, in_spec],
                out_specs=pl.BlockSpec((1, 8, _LANES), lambda s, i: (s, 0, 0)),
                scratch_shapes=[pltpu.VMEM((8, _LANES), jnp.float32)],
            ),
            compiler_params=pltpu.CompilerParams(
                dimension_semantics=("parallel", "arbitrary"),
                vmem_limit_bytes=_VMEM_LIMIT),
        )(x, t)
        # Tiny (nsplits*8*128) tree reduce of the per-split partials.
        return jnp.sum(partials)
    else:  # reduction == 'none': elementwise focal loss, same shape & dtype as inputs
        kernel = functools.partial(
            _focal_elem_kernel, alpha=float(alpha), gamma=float(gamma),
            binary_targets=bool(assume_binary_targets), approx_recip=False)
        blk = pl.BlockSpec((block_rows, _LANES), lambda i: (i, 0))
        out = pl.pallas_call(
            kernel,
            out_shape=jax.ShapeDtypeStruct((rows_padded, _LANES), inputs.dtype),
            grid_spec=pltpu.PrefetchScalarGridSpec(
                num_scalar_prefetch=0,
                grid=(nsplits * steps,),
                in_specs=[blk, blk],
                out_specs=blk,
            ),
            compiler_params=pltpu.CompilerParams(
                dimension_semantics=("parallel",),
                vmem_limit_bytes=_VMEM_LIMIT),
        )(x, t)
        out = out.reshape(-1)
        if out.shape[0] != n:
            # TODO(synk): a separate tail block would avoid this slice copy.
            out = out[:n]
        return out.reshape(orig_shape)


def _focal_loss_ref(inputs, targets, alpha=1.0, gamma=2.0, reduction="mean"):
    x = inputs.astype(jnp.float32)
    t = targets.astype(jnp.float32)
    bce = jnp.maximum(x, 0.0) - x * t + jnp.log1p(jnp.exp(-jnp.abs(x)))
    p = jax.nn.sigmoid(x)
    pt = p * t + (1.0 - p) * (1.0 - t)
    fl = alpha * jnp.power(1.0 - pt, gamma) * bce
    if reduction == "mean":
        return fl.mean()
    if reduction == "sum":
        return fl.sum()
    return fl


if __name__ == "__main__":
    key = jax.random.PRNGKey(0)
    k1, k2, k3, k4, k5, k6, k7, k8 = jax.random.split(key, 8)

    # Binary segmentation-head sized inputs: logits + {0,1} float targets.
    shape = (2, 4, 16, 16)
    inputs = jax.random.normal(k1, shape, dtype=jnp.float32)
    targets = jax.random.bernoulli(k2, 0.3, shape).astype(jnp.float32)

    # mean / sum use the approx EUP reciprocal -> compare with a looser rtol.
    out = jax.block_until_ready(
        focal_loss(inputs, targets, alpha=1.0, gamma=2.0, reduction="mean"))
    ref = _focal_loss_ref(inputs, targets, 1.0, 2.0, "mean")
    assert jnp.allclose(out, ref, rtol=5e-3, atol=1e-4), (out, ref)

    out_sum = jax.block_until_ready(
        focal_loss(inputs, targets, alpha=1.0, gamma=2.0, reduction="sum"))
    ref_sum = _focal_loss_ref(inputs, targets, reduction="sum")
    assert jnp.allclose(out_sum, ref_sum, rtol=5e-3, atol=1e-3), (out_sum, ref_sum)

    # Elementwise path uses the exact reciprocal -> tight tolerance.
    out_none = jax.block_until_ready(
        focal_loss(inputs, targets, alpha=1.0, gamma=2.0, reduction="none"))
    ref_none = _focal_loss_ref(inputs, targets, reduction="none")
    assert out_none.shape == shape and out_none.dtype == inputs.dtype
    assert jnp.allclose(out_none, ref_none, rtol=1e-5, atol=1e-5)

    # bf16 logits + int8 binary targets: exercises native-dtype streaming and
    # the shortened binary-target compute chain.
    shape_b = (8, 16, 32)                                  # 4096 elems, 32 rows
    x_bf16 = jax.random.normal(k3, shape_b, dtype=jnp.float32).astype(jnp.bfloat16)
    t_i8 = jax.random.bernoulli(k4, 0.5, shape_b).astype(jnp.int8)
    out_b = jax.block_until_ready(
        focal_loss(x_bf16, t_i8, reduction="mean", assume_binary_targets=True))
    ref_b = _focal_loss_ref(x_bf16, t_i8, reduction="mean")
    assert jnp.allclose(out_b, ref_b, rtol=5e-3, atol=1e-4), (out_b, ref_b)

    # Non-128-aligned size: exercises the sentinel-padded tail path.
    shape2 = (3, 5, 7)                                     # 105 elements
    x2 = jax.random.normal(k5, shape2, dtype=jnp.float32)
    t2 = jax.random.bernoulli(k6, 0.5, shape2).astype(jnp.float32)
    out2 = jax.block_until_ready(focal_loss(x2, t2, reduction="mean"))
    ref2 = _focal_loss_ref(x2, t2, reduction="mean")
    assert jnp.allclose(out2, ref2, rtol=5e-3, atol=1e-4), (out2, ref2)

    # Larger size: exercises the multi-block (splits x steps) accumulation path.
    shape3 = (8, 512, 256)                                 # 1,048,576 elements
    x3 = jax.random.normal(k7, shape3, dtype=jnp.float32)
    t3 = jax.random.bernoulli(k8, 0.3, shape3).astype(jnp.float32)
    out3 = jax.block_until_ready(focal_loss(x3, t3, reduction="mean"))
    ref3 = _focal_loss_ref(x3, t3, reduction="mean")
    assert jnp.allclose(out3, ref3, rtol=5e-3, atol=1e-4), (out3, ref3)

    print("KERNEL_OK")
</pallas_src>

<mosaic_0001>
module attributes {stable_mosaic.version = 11 : i64} {
  func.func @_focal_reduce_kernel(%arg0: i32, %arg1: i32, %arg2: memref<16x128xf32, #tpu.memory_space<vmem>>, %arg3: memref<16x128xf32, #tpu.memory_space<vmem>>, %arg4: memref<1x8x128xf32, #tpu.memory_space<vmem>>, %arg5: memref<8x128xf32, #tpu.memory_space<vmem>>) attributes {dimension_semantics = [#tpu.dimension_semantics<parallel>, #tpu.dimension_semantics<arbitrary>], iteration_bounds = array<i64: 1, 1>, scalar_prefetch = 0 : i64, scratch_operands = 1 : i64, tpu.core_type = #tpu.core_type<tc>, window_params = [{transform_indices = @transform_0, window_bounds = array<i64: 16, 128>}, {transform_indices = @transform_1, window_bounds = array<i64: 16, 128>}, {transform_indices = @transform_2, window_bounds = array<i64: 1, 8, 128>}]} {
    %c0_i32 = arith.constant 0 : i32
    %0 = arith.cmpi eq, %arg1, %c0_i32 : i32
    %1 = arith.extui %0 : i1 to i32
    %c0_i32_0 = arith.constant 0 : i32
    %2 = arith.cmpi ne, %1, %c0_i32_0 : i32
    scf.if %2 {
      %cst_18 = arith.constant 0.000000e+00 : f32
      %43 = vector.broadcast %cst_18 : f32 to vector<8x128xf32>
      %c0_19 = arith.constant 0 : index
      %c0_20 = arith.constant 0 : index
      %44 = vector.load %arg5[%c0_19, %c0_20] : memref<8x128xf32, #tpu.memory_space<vmem>>, vector<8x128xf32>
      tpu.vector_store %arg5[%c0_19, %c0_20], %43 {strides = array<i32>} : memref<8x128xf32, #tpu.memory_space<vmem>>, vector<8x128xf32>,
    } else {
    }
    %c0 = arith.constant 0 : index
    %c0_1 = arith.constant 0 : index
    %3 = vector.load %arg2[%c0, %c0_1] : memref<16x128xf32, #tpu.memory_space<vmem>>, vector<16x128xf32>
    %c0_2 = arith.constant 0 : index
    %c0_3 = arith.constant 0 : index
    %4 = vector.load %arg3[%c0_2, %c0_3] : memref<16x128xf32, #tpu.memory_space<vmem>>, vector<16x128xf32>
    %5 = math.absf %3 : vector<16x128xf32>
    %cst = arith.constant 0.000000e+00 : f32
    %6 = vector.broadcast %cst : f32 to vector<16x128xf32>
    %7 = arith.subf %6, %5 : vector<16x128xf32>
    %8 = math.exp %7 : vector<16x128xf32>
    %cst_4 = arith.constant 1.000000e+00 : f32
    %9 = vector.broadcast %cst_4 : f32 to vector<16x128xf32>
    %10 = arith.addf %9, %8 : vector<16x128xf32>
    %11 = tpu.reciprocal %10 {approx = true} : vector<16x128xf32> -> vector<16x128xf32>
    %cst_5 = arith.constant 0.000000e+00 : f32
    %12 = vector.broadcast %cst_5 : f32 to vector<16x128xf32>
    %13 = arith.cmpf oge, %3, %12 : vector<16x128xf32>
    %14 = arith.mulf %8, %11 : vector<16x128xf32>
    %15 = arith.select %13, %11, %14 : vector<16x128xi1>, vector<16x128xf32>
    %16 = math.log1p %8 : vector<16x128xf32>
    %cst_6 = arith.constant 0.000000e+00 : f32
    %17 = vector.broadcast %cst_6 : f32 to vector<16x128xf32>
    %18 = arith.maximumf %3, %17 : vector<16x128xf32>
    %19 = arith.mulf %3, %4 : vector<16x128xf32>
    %20 = arith.subf %18, %19 : vector<16x128xf32>
    %21 = arith.addf %20, %16 : vector<16x128xf32>
    %22 = arith.mulf %15, %4 : vector<16x128xf32>
    %cst_7 = arith.constant 1.000000e+00 : f32
    %23 = vector.broadcast %cst_7 : f32 to vector<16x128xf32>
    %24 = arith.subf %23, %15 : vector<16x128xf32>
    %cst_8 = arith.constant 1.000000e+00 : f32
    %25 = vector.broadcast %cst_8 : f32 to vector<16x128xf32>
    %26 = arith.subf %25, %4 : vector<16x128xf32>
    %27 = arith.mulf %24, %26 : vector<16x128xf32>
    %28 = arith.addf %22, %27 : vector<16x128xf32>
    %cst_9 = arith.constant 1.000000e+00 : f32
    %29 = vector.broadcast %cst_9 : f32 to vector<16x128xf32>
    %30 = arith.subf %29, %28 : vector<16x128xf32>
    %31 = arith.mulf %30, %30 : vector<16x128xf32>
    %cst_10 = arith.constant 1.000000e+00 : f32
    %32 = vector.broadcast %cst_10 : f32 to vector<16x128xf32>
    %33 = arith.mulf %32, %31 : vector<16x128xf32>
    %34 = arith.mulf %33, %21 : vector<16x128xf32>
    %c0_11 = arith.constant 0 : index
    %c0_12 = arith.constant 0 : index
    %35 = vector.load %arg5[%c0_11, %c0_12] : memref<8x128xf32, #tpu.memory_space<vmem>>, vector<8x128xf32>
    %36 = vector.shape_cast %34 : vector<16x128xf32> to vector<2x8x128xf32>
    %cst_13 = arith.constant dense<0.000000e+00> : vector<8x128xf32>
    %37 = vector.multi_reduction <add>, %36, %cst_13 [0] : vector<2x8x128xf32> to vector<8x128xf32>
    %38 = arith.addf %35, %37 : vector<8x128xf32>
    %c0_14 = arith.constant 0 : index
    %c0_15 = arith.constant 0 : index
    %39 = vector.load %arg5[%c0_14, %c0_15] : memref<8x128xf32, #tpu.memory_space<vmem>>, vector<8x128xf32>
    tpu.vector_store %arg5[%c0_14, %c0_15], %38 {strides = array<i32>} : memref<8x128xf32, #tpu.memory_space<vmem>>, vector<8x128xf32>,
    %c0_i32_16 = arith.constant 0 : i32
    %40 = arith.cmpi eq, %arg1, %c0_i32_16 : i32
    %41 = arith.extui %40 : i1 to i32
    %c0_i32_17 = arith.constant 0 : i32
    %42 = arith.cmpi ne, %41, %c0_i32_17 : i32
    scf.if %42 {
      %c0_18 = arith.constant 0 : index
      %c0_19 = arith.constant 0 : index
      %43 = vector.load %arg5[%c0_18, %c0_19] : memref<8x128xf32, #tpu.memory_space<vmem>>, vector<8x128xf32>
      %cst_20 = arith.constant 4.8828125E-4 : f32
      %44 = vector.broadcast %cst_20 : f32 to vector<8x128xf32>
      %45 = arith.mulf %43, %44 : vector<8x128xf32>
      %c0_21 = arith.constant 0 : index
      %c0_22 = arith.constant 0 : index
      %c0_23 = arith.constant 0 : index
      %46 = vector.load %arg4[%c0_21, %c0_22, %c0_23] : memref<1x8x128xf32, #tpu.memory_space<vmem>>, vector<1x8x128xf32>
      %47 = vector.shape_cast %46 : vector<1x8x128xf32> to vector<8x128xf32>
      %48 = vector.shape_cast %45 : vector<8x128xf32> to vector<1x8x128xf32>
      tpu.vector_store %arg4[%c0_21, %c0_22, %c0_23], %48 {strides = array<i32>} : memref<1x8x128xf32, #tpu.memory_space<vmem>>, vector<1x8x128xf32>,
    } else {
    }
    return
  }
  func.func @transform_0(%arg0: i32, %arg1: i32) -> (i32, i32) {
    %c1_i32 = arith.constant 1 : i32
    %0 = arith.muli %arg0, %c1_i32 : i32
    %1 = arith.addi %0, %arg1 : i32
    %c0_i32 = arith.constant 0 : i32
    %c0_i32_0 = arith.constant 0 : i32
    return %1, %c0_i32 : i32, i32
  }
  func.func @transform_1(%arg0: i32, %arg1: i32) -> (i32, i32) {
    %c1_i32 = arith.constant 1 : i32
    %0 = arith.muli %arg0, %c1_i32 : i32
    %1 = arith.addi %0, %arg1 : i32
    %c0_i32 = arith.constant 0 : i32
    %c0_i32_0 = arith.constant 0 : i32
    return %1, %c0_i32 : i32, i32
  }
  func.func @transform_2(%arg0: i32, %arg1: i32) -> (i32, i32, i32) {
    %c0_i32 = arith.constant 0 : i32
    %c0_i32_0 = arith.constant 0 : i32
    %c0_i32_1 = arith.constant 0 : i32
    return %arg0, %c0_i32, %c0_i32_0 : i32, i32, i32
  }
}

</mosaic_0001>

<llo_original>
// kernel: tpu_custom_call.1
$region0: #{tpu_custom_call.1}
  #allocation0 [shape = 'u32[]', space=smem, size = 0x4, offset = 0x4, fixed_abs, tag = 'smem constant byte address 0x4 - core index']
  #allocation1 [shape = 'u32[144,128]{1,0:T(1,128)}', space=vmem, size = 0x12000, scoped, tag = 'internal scratch']
  #allocation2 [shape = 'f32[8,128]{1,0:T(8,128)}', space=vmem, size = 0x1000, scoped, tag = 'scratch operand']
  %s0 = inlined_call_operand.hbm [shape: f32[16,128], index: 0, kind: input, shape index: {}]
  %s1 = inlined_call_operand.hbm [shape: f32[16,128], index: 1, kind: input, shape index: {}]
  %s2 = inlined_call_operand.hbm [shape: f32[1,8,128], index: 2, kind: output, shape index: {}]
  %s3 = sld [smem:[#allocation0]]
  $region34: #{tpu_custom_call.1} parent=0
    _
  %s5 = ssub.s32 1, %s3
  %s6 = scalar_select 0, %s5, %s3
  $region1: #{tpu_custom_call.1} parent=0
    #allocation3 [shape = 'u8[8192]{0}', space=vmem, size = 0x2000, scoped, tag = 'input window, operand 0, single buffered']
    #allocation4 [shape = 's32[1]{0}', space=sflag, size = 0x4, scoped, tag = 'scoped memory for tpu_custom_call.1']
    #allocation5 [shape = 's32[1]{0}', space=sflag, size = 0x4, scoped, tag = 'scoped memory for tpu_custom_call.1']
    #allocation6 [shape = 'u8[8192]{0}', space=vmem, size = 0x2000, scoped, tag = 'input window, operand 1, single buffered']
    #allocation7 [shape = 's32[1]{0}', space=sflag, size = 0x4, scoped, tag = 'scoped memory for tpu_custom_call.1']
    #allocation8 [shape = 'u8[4096]{0}', space=vmem, size = 0x1000, scoped, tag = 'output window, operand 0, single buffered']
    %7 = vsyncpa [#allocation4], 0
    %8 = vsyncpa [#allocation7], 0
    %9 = vsyncpa [#allocation5], 0
    // Predicated region
    $region2: #{tpu_custom_call.1} parent=1 // pred_check
      _
    $region3: #{tpu_custom_call.1} parent=1 // pred_check_branch
      %11 = sbr.rel (0) target = $region5
    $region4: #{tpu_custom_call.1} parent=1 // pred_region
      %s12 = sadd.s32 0, 0
      %s13 = smul.u32 2, %s12
      %s15 = ssub.s32 256, 256
      %16 = vsyncadd [#allocation4], %s15
      %s17 = smul.addr %s13, 128
      %s18 = scalar_lea.hbm %s0, %s17
      %s19 = sshll.u32 [#allocation3], 4
      %s20 = int_to_ptr.vmem [resolvable:$true] %s19
      %25 = dma.hbm_to_vmem [thread:$0]  %s18, 256, %s20, [#allocation4], 128, 128, 8
    $region5: #{tpu_custom_call.1} parent=1 // pred_fallthru
      _
    // Predicated region
    $region6: #{tpu_custom_call.1} parent=1 // pred_check
      _
    $region7: #{tpu_custom_call.1} parent=1 // pred_check_branch
      %27 = sbr.rel (0) target = $region9
    $region8: #{tpu_custom_call.1} parent=1 // pred_region
      %s28 = sadd.s32 0, 0
      %s29 = smul.u32 2, %s28
      %s31 = ssub.s32 256, 256
      %32 = vsyncadd [#allocation7], %s31
      %s33 = smul.addr %s29, 128
      %s34 = scalar_lea.hbm %s1, %s33
      %s35 = sshll.u32 [#allocation6], 4
      %s36 = int_to_ptr.vmem [resolvable:$true] %s35
      %41 = dma.hbm_to_vmem [thread:$0]  %s34, 256, %s36, [#allocation7], 128, 128, 8
    $region9: #{tpu_custom_call.1} parent=1 // pred_fallthru
      _
    // Predicated region
    $region10: #{tpu_custom_call.1} parent=1 // pred_check
      _
    $region11: #{tpu_custom_call.1} parent=1 // pred_check_branch
      %43 = sbr.rel (0) target = $region13
    $region12: #{tpu_custom_call.1} parent=1 // pred_region
      %44 = dma.done [#allocation4], 256
    $region13: #{tpu_custom_call.1} parent=1 // pred_fallthru
      _
    // Predicated region
    $region14: #{tpu_custom_call.1} parent=1 // pred_check
      _
    $region15: #{tpu_custom_call.1} parent=1 // pred_check_branch
      %46 = sbr.rel (0) target = $region17
    $region16: #{tpu_custom_call.1} parent=1 // pred_region
      %47 = dma.done [#allocation7], 256
    $region17: #{tpu_custom_call.1} parent=1 // pred_fallthru
      _
    %s48 = sadd.s32 0, 0
    %s49 = smul.u32 2, %s48
    %s50 = sadd.s32 0, 0
    %s51 = smul.u32 2, %s50
    %p52 = scmp.eq.s32.totalorder 0, 0
    // Predicated region
    $region18: #{tpu_custom_call.1} parent=1 // pred_check
      %p53 = pneg %p52
    $region19: #{tpu_custom_call.1} parent=1 // pred_check_branch
      %55 = sbr.rel (%p53) target = $region21
    $region20: #{tpu_custom_call.1} parent=1 // pred_region
      %56 = vst [vmem:[#allocation2] sm:$0xff] 0.0
    $region21: #{tpu_custom_call.1} parent=1 // pred_fallthru
      _
    %v57 = vld [vmem:[#allocation3] sm:$0xff]
    %v58 = vld [vmem:[#allocation3 + $0x8] sm:$0xff]
    %v59 = vld [vmem:[#allocation6] sm:$0xff]
    %v60 = vld [vmem:[#allocation6 + $0x8] sm:$0xff]
    %v61 = vand.u32 2147483647, %v57
    %v62 = vand.u32 2147483647, %v58
    %v63 = vsub.f32 0.0, %v61
    %v64 = vsub.f32 0.0, %v62
    %v65 = vmul.f32 %v63, 1.442695
    %v66 = vpow.pop %v65
    %v67 = vmul.f32 %v64, 1.442695
    %v68 = vpow.pop %v67
    %v69 = vadd.f32 %v66, 1.0
    %v70 = vadd.f32 %v68, 1.0
    %v71 = vrcp.pop %v69
    %v72 = vrcp.pop %v70
    %vm73 = vcmp.ge.f32.partialorder %v57, 0.0
    %vm74 = vcmp.ge.f32.partialorder %v58, 0.0
    %v75 = vmul.f32 %v66, %v71
    %v76 = vmul.f32 %v68, %v72
    %v77 = vsel %vm73, %v71, %v75
    %v78 = vsel %vm74, %v72, %v76
    %v79 = vadd.f32 %v66, 1.0
    %v80 = vlog2.pop %v79
    %v81 = vmul.f32 %v80, 0.6931472
    %v82 = vmul.f32 -0.5, %v66
    %v83 = vadd.f32 %v82, 1.0
    %v84 = vmul.f32 %v83, %v66
    %v85 = vand.u32 2147483647, %v66
    %vm86 = vcmp.lt.f32.partialorder %v85, 0.0004427343
    %v87 = vsel %vm86, %v84, %v81
    %v88 = vadd.f32 %v68, 1.0
    %v89 = vlog2.pop %v88
    %v90 = vmul.f32 %v89, 0.6931472
    %v91 = vmul.f32 -0.5, %v68
    %v92 = vadd.f32 %v91, 1.0
    %v93 = vmul.f32 %v92, %v68
    %v94 = vand.u32 2147483647, %v68
    %vm95 = vcmp.lt.f32.partialorder %v94, 0.0004427343
    %v96 = vsel %vm95, %v93, %v90
    %v97 = vmax.f32 %v57, 0.0
    %v98 = vmax.f32 %v58, 0.0
    %v99 = vmul.f32 %v57, %v59
    %v100 = vmul.f32 %v58, %v60
    %v101 = vsub.f32 %v97, %v99
    %v102 = vsub.f32 %v98, %v100
    %v103 = vadd.f32 %v101, %v87
    %v104 = vadd.f32 %v102, %v96
    %v105 = vmul.f32 %v77, %v59
    %v106 = vmul.f32 %v78, %v60
    %v107 = vsub.f32 1.0, %v77
    %v108 = vsub.f32 1.0, %v78
    %v109 = vsub.f32 1.0, %v59
    %v110 = vsub.f32 1.0, %v60
    %v111 = vmul.f32 %v107, %v109
    %v112 = vmul.f32 %v108, %v110
    %v113 = vadd.f32 %v105, %v111
    %v114 = vadd.f32 %v106, %v112
    %v115 = vsub.f32 1.0, %v113
    %v116 = vsub.f32 1.0, %v114
    %v117 = vmul.f32 %v115, %v115
    %v118 = vmul.f32 %v116, %v116
    %v119 = vmul.f32 %v117, %v103
    %v120 = vmul.f32 %v118, %v104
    %v121 = vld [vmem:[#allocation2] sm:$0xff]
    %v122 = vadd.f32 %v119, %v120
    %v123 = vadd.f32 %v121, %v122
    %124 = vst [vmem:[#allocation2] sm:$0xff] %v123
    // Predicated region
    $region22: #{tpu_custom_call.1} parent=1 // pred_check
      %p125 = pneg %p52
    $region23: #{tpu_custom_call.1} parent=1 // pred_check_branch
      %127 = sbr.rel (%p125) target = $region25
    $region24: #{tpu_custom_call.1} parent=1 // pred_region
      %v128 = vld [vmem:[#allocation2] sm:$0xff]
      %v129 = vmul.f32 %v128, 0.00048828125
      %130 = vst [vmem:[#allocation8] sm:$0xff] %v129
    $region25: #{tpu_custom_call.1} parent=1 // pred_fallthru
      _
    // Predicated region
    $region26: #{tpu_custom_call.1} parent=1 // pred_check
      _
    $region27: #{tpu_custom_call.1} parent=1 // pred_check_branch
      %132 = sbr.rel (0) target = $region29
    $region28: #{tpu_custom_call.1} parent=1 // pred_region
      %s134 = ssub.s32 128, 128
      %135 = vsyncadd [#allocation5], %s134
      %s137 = sshll.u32 [#allocation8], 4
      %s138 = int_to_ptr.vmem [resolvable:$true] %s137
      %140 = dma.vmem_to_hbm [thread:$0]  %s138, 128, %s2, [#allocation5]
    $region29: #{tpu_custom_call.1} parent=1 // pred_fallthru
      _
    // Predicated region
    $region30: #{tpu_custom_call.1} parent=1 // pred_check
      _
    $region31: #{tpu_custom_call.1} parent=1 // pred_check_branch
      %142 = sbr.rel (0) target = $region33
    $region32: #{tpu_custom_call.1} parent=1 // pred_region
      %143 = dma.done [#allocation5], 128
    $region33: #{tpu_custom_call.1} parent=1 // pred_fallthru
      _
    %144 = vsyncpa [#allocation4], 1
    %145 = vsyncpa [#allocation7], 1
    %146 = vsyncpa [#allocation5], 1

</llo_original>
